<compile_context>
chip_gen: v7x
topology: tpu7x:2x2x1
jax: 0.10.0
libtpu: 0.0.40
codegen_flags: <defaults>
</compile_context>

<pallas_src>
import jax
import jax.numpy as jnp
from jax.experimental import pallas as pl
from jax.experimental.pallas import tpu as pltpu

_LANE = 128
_MiB = 1024 * 1024


def _sublane(dtype):
    itemsize = jnp.dtype(dtype).itemsize
    if itemsize >= 4:
        return 8
    if itemsize == 2:
        return 16
    return 32          # int8 / fp8 rows pack 4-deep per sublane


def _round_up(x, m):
    return ((x + m - 1) // m) * m


# ---------------------------------------------------------------------------
# Kernels
# ---------------------------------------------------------------------------

def _make_fused_kernel(h_tile_is_full):
    """Fused-RHS kernel (H % 128 == 0). Per grid step (i, j) it consumes the
    interleaved weight block [Wg_z_j | Wz_j^T] (K, 2*TN), the Wg_h (H, TN)
    column block, and writes the (TB, TN) output tile."""
    if h_tile_is_full:
        # TN == H (no N tiling): the blend operand is the full h block.
        def kernel(h_ref, z_ref, wgh_ref, wzf_ref, bf_ref, o_ref):
            TN = o_ref.shape[-1]
            h = h_ref[...]                                       # [TB, H]
            z = z_ref[...]                                       # [TB, K]
            # z @ [Wg_z | Wz^T] + [bg | bz]  ->  [TB, 2*TN] (f32 accumulate)
            zz = (jnp.dot(z, wzf_ref[...], preferred_element_type=jnp.float32)
                  + bf_ref[...])
            gate_pre = (jnp.dot(h, wgh_ref[...],
                                preferred_element_type=jnp.float32)
                        + zz[:, :TN])
            g = jax.nn.sigmoid(gate_pre)                         # f32 (EUP)
            z_proj = zz[:, TN:]
            hf = h.astype(jnp.float32)
            # g*h + (1-g)*z_proj == z_proj + g*(h - z_proj)
            o_ref[...] = (z_proj + g * (hf - z_proj)).astype(o_ref.dtype)
        return kernel

    def kernel(h_ref, hb_ref, z_ref, wgh_ref, wzf_ref, bf_ref, o_ref):
        TN = o_ref.shape[-1]
        h = h_ref[...]                                           # [TB, H]
        z = z_ref[...]                                           # [TB, K]
        zz = (jnp.dot(z, wzf_ref[...], preferred_element_type=jnp.float32)
              + bf_ref[...])
        gate_pre = (jnp.dot(h, wgh_ref[...],
                            preferred_element_type=jnp.float32)
                    + zz[:, :TN])
        g = jax.nn.sigmoid(gate_pre)
        z_proj = zz[:, TN:]
        hf = hb_ref[...].astype(jnp.float32)                     # j-th N tile of h
        o_ref[...] = (z_proj + g * (hf - z_proj)).astype(o_ref.dtype)
    return kernel


def _gating_fusion_kernel_unfused(h_ref, z_ref, wgh_ref, wgz_ref, wzt_ref,
                                  bg_ref, bz_ref, o_ref):
    """Fallback for lane-unaligned H (H % 128 != 0): separate RHS matmuls, so
    no lane-unaligned slices of a fused accumulator are needed."""
    h = h_ref[...]
    z = z_ref[...]
    gate_pre = (jnp.dot(h, wgh_ref[...], preferred_element_type=jnp.float32)
                + jnp.dot(z, wgz_ref[...], preferred_element_type=jnp.float32)
                + bg_ref[...])
    g = jax.nn.sigmoid(gate_pre)
    z_proj = (jnp.dot(z, wzt_ref[...], preferred_element_type=jnp.float32)
              + bz_ref[...])
    hf = h.astype(jnp.float32)
    o_ref[...] = (z_proj + g * (hf - z_proj)).astype(o_ref.dtype)


# ---------------------------------------------------------------------------
# One-time parameter preparation (model-setup time, not per forward)
# ---------------------------------------------------------------------------

def _pick_tn(H, K, w_itemsize):
    """Output-feature (N) tile. If the whole weight set comfortably fits VMEM
    it stays resident (TN=H, single-buffered); otherwise stream TN-wide blocks
    (multiple of 128) double-buffered under a ~16 MiB weight budget."""
    full_resident = (H * H + 2 * K * H) * w_itemsize + 2 * H * 4
    if full_resident <= 8 * _MiB:
        return H
    for tn in (512, 256, 128):
        if H % tn == 0 and 2 * (H * tn + 2 * K * tn) * w_itemsize <= 16 * _MiB:
            return tn
    return 128


def prepare_gating_fusion_params(wg, bg, wz, bz, *, block_n=None):
    """One-time weight re-layout (hoisted out of the per-call path).

    wg: [H, H+K] (PyTorch Linear, out x in), bg: [H]
    wz: [H, K],  bz: [H]
    """
    H = wg.shape[0]
    K = wz.shape[1]
    wg_h = jnp.transpose(wg[:, :H])                  # [H, H]  (in, out)
    wg_z = jnp.transpose(wg[:, H:])                  # [K, H]
    wz_t = jnp.transpose(wz)                         # [K, H]
    bg_f = bg.astype(jnp.float32).reshape(1, H)      # biases kept in f32
    bz_f = bz.astype(jnp.float32).reshape(1, H)

    if H % _LANE != 0:
        # Lane-unaligned hidden dim: unfused layout, no accumulator slicing.
        return dict(fused=False, H=H, K=K, block_n=H,
                    wg_h=wg_h, wg_z=wg_z, wz_t=wz_t, bg=bg_f, bz=bz_f)

    TN = block_n if block_n is not None else _pick_tn(H, K, jnp.dtype(wg.dtype).itemsize)
    assert H % TN == 0 and TN % _LANE == 0, "block_n must divide H and be a multiple of 128"
    n_j = H // TN

    # Interleaved fused RHS: block j holds [Wg_z_j | Wz_j^T]  ->  (K, n_j*2*TN)
    wz_fused = jnp.concatenate(
        [wg_z.reshape(K, n_j, TN), wz_t.reshape(K, n_j, TN)], axis=-1
    ).reshape(K, n_j * 2 * TN)
    # Matching fused bias [bg_j | bz_j]  ->  (1, n_j*2*TN), already f32.
    b_fused = jnp.concatenate(
        [bg_f.reshape(1, n_j, TN), bz_f.reshape(1, n_j, TN)], axis=-1
    ).reshape(1, n_j * 2 * TN)

    return dict(fused=True, H=H, K=K, block_n=TN,
                wg_h=wg_h, wz_fused=wz_fused, b_fused=b_fused)


# ---------------------------------------------------------------------------
# Tile selection & wrapper
# ---------------------------------------------------------------------------

def _pick_tb(B, H, K, TN, dtype, tile_budget=24 * _MiB):
    """Largest sublane-aligned batch tile (<=512) whose double-buffered
    h/z/out tiles plus f32 intermediates fit the tile budget, preferring
    >= 2 batch grid steps (pipelining + megacore sharding)."""
    sub = _sublane(dtype)
    itemsize = jnp.dtype(dtype).itemsize

    def step_bytes(tb):
        tiles = 2 * tb * (H + K + TN) * itemsize     # double-buffered h/z/out
        interm = 6 * tb * TN * 4                     # zz/gate/blend f32 temps
        return tiles + interm

    tb = min(512, _round_up(B, sub))
    if B > sub:                                      # leave >= 2 grid steps
        tb = min(tb, _round_up(pl.cdiv(B, 2), sub))
    tb = max(sub, (tb // sub) * sub)
    while tb > sub and step_bytes(tb) > tile_budget:
        tb -= sub
    return tb


def gating_fusion(h_m, z_m, params, *, block_b=None):
    """h_m: [B, H], z_m: [B, K]; params from prepare_gating_fusion_params()."""
    B, H = h_m.shape
    K = z_m.shape[1]
    assert params["H"] == H and params["K"] == K
    dtype = h_m.dtype
    itemsize = jnp.dtype(dtype).itemsize

    cost = pl.CostEstimate(
        flops=2 * B * H * (H + 2 * K),
        transcendentals=B * H,
        bytes_accessed=(B * (H + K) + H * H + 2 * K * H + B * H) * itemsize
                       + 2 * H * 4,
    )

    if not params["fused"]:
        # ---------------- unfused fallback path (H % 128 != 0) --------------
        TB = block_b if block_b is not None else _pick_tb(B, H, K, H, dtype)
        grid = (pl.cdiv(B, TB),)
        resident = pl.Buffered(1)        # constant index_map -> single buffer
        w_itemsize = jnp.dtype(params["wg_h"].dtype).itemsize
        need = ((H * H + 2 * K * H) * w_itemsize + 2 * H * 4
                + 2 * TB * (2 * H + K) * itemsize + 6 * TB * H * 4)
        vmem_limit = int(min(max(1.3 * need + 4 * _MiB, 32 * _MiB), 64 * _MiB))
        return pl.pallas_call(
            _gating_fusion_kernel_unfused,
            out_shape=jax.ShapeDtypeStruct((B, H), dtype),
            grid=grid,
            in_specs=[
                pl.BlockSpec((TB, H), lambda i: (i, 0)),
                pl.BlockSpec((TB, K), lambda i: (i, 0)),
                pl.BlockSpec((H, H), lambda i: (0, 0), pipeline_mode=resident),
                pl.BlockSpec((K, H), lambda i: (0, 0), pipeline_mode=resident),
                pl.BlockSpec((K, H), lambda i: (0, 0), pipeline_mode=resident),
                pl.BlockSpec((1, H), lambda i: (0, 0), pipeline_mode=resident),
                pl.BlockSpec((1, H), lambda i: (0, 0), pipeline_mode=resident),
            ],
            out_specs=pl.BlockSpec((TB, H), lambda i: (i, 0)),
            compiler_params=pltpu.CompilerParams(
                dimension_semantics=("parallel",),
                vmem_limit_bytes=vmem_limit),
            cost_estimate=cost,
        )(h_m, z_m, params["wg_h"], params["wg_z"], params["wz_t"],
          params["bg"], params["bz"])

    # ------------------- fused path (H % 128 == 0) --------------------------
    TN = params["block_n"]
    n_j = H // TN
    TB = block_b if block_b is not None else _pick_tb(B, H, K, TN, dtype)
    grid = (pl.cdiv(B, TB), n_j)

    w_itemsize = jnp.dtype(params["wg_h"].dtype).itemsize
    w_step = (H * TN + 2 * K * TN) * w_itemsize + 2 * TN * 4
    n_wbuf = 1 if n_j == 1 else 2
    need = n_wbuf * w_step + 2 * TB * (H + K + TN) * itemsize + 6 * TB * TN * 4
    vmem_limit = int(min(max(1.3 * need + 4 * _MiB, 32 * _MiB), 64 * _MiB))

    def w_spec(shape):
        if n_j == 1:      # VMEM-resident weights: fetched once, single buffer
            return pl.BlockSpec(shape, lambda i, j: (0, 0),
                                pipeline_mode=pl.Buffered(1))
        return pl.BlockSpec(shape, lambda i, j: (0, j))          # streamed

    in_specs = [pl.BlockSpec((TB, H), lambda i, j: (i, 0))]      # h (gate LHS)
    args = [h_m]
    if n_j > 1:
        # j-th N tile of h for the blend; the (TB, H) LHS block above is
        # reused across j (index_map ignores j), this small tile streams.
        in_specs.append(pl.BlockSpec((TB, TN), lambda i, j: (i, j)))
        args.append(h_m)
    in_specs += [
        pl.BlockSpec((TB, K), lambda i, j: (i, 0)),              # z
        w_spec((H, TN)),                                         # Wg_h[:, j]
        w_spec((K, 2 * TN)),                                     # [Wg_z_j | Wz_j^T]
        w_spec((1, 2 * TN)),                                     # [bg_j | bz_j] (f32)
    ]
    args += [z_m, params["wg_h"], params["wz_fused"], params["b_fused"]]

    kernel = _make_fused_kernel(h_tile_is_full=(n_j == 1))

    return pl.pallas_call(
        kernel,
        out_shape=jax.ShapeDtypeStruct((B, H), dtype),
        grid=grid,
        in_specs=in_specs,
        out_specs=pl.BlockSpec((TB, TN), lambda i, j: (i, j)),
        compiler_params=pltpu.CompilerParams(
            # Batch axis shardable across TensorCores; keep the N axis
            # sequential so the (TB, H) LHS block is reused across j.
            dimension_semantics=("parallel", "arbitrary"),
            vmem_limit_bytes=vmem_limit),
        cost_estimate=cost,
    )(*args)


# ---------------------------------------------------------------------------
# Reference + self-test
# ---------------------------------------------------------------------------

def gating_fusion_ref(h_m, z_m, wg, bg, wz, bz):
    cat = jnp.concatenate([h_m, z_m], axis=-1)
    g = jax.nn.sigmoid(cat @ wg.T + bg)
    z_proj = z_m @ wz.T + bz
    return g * h_m + (1.0 - g) * z_proj


def _make_case(key, B, H, K, dtype):
    k_h, k_z, k_wg, k_bg, k_wz, k_bz = jax.random.split(key, 6)
    h_m = jax.random.normal(k_h, (B, H), jnp.float32).astype(dtype)
    z_m = jax.random.normal(k_z, (B, K), jnp.float32).astype(dtype)
    lim_g = 1.0 / jnp.sqrt(jnp.float32(H + K))
    lim_z = 1.0 / jnp.sqrt(jnp.float32(K))
    wg = jax.random.uniform(k_wg, (H, H + K), jnp.float32, -lim_g, lim_g).astype(dtype)
    bg = jax.random.uniform(k_bg, (H,), jnp.float32, -lim_g, lim_g).astype(dtype)
    wz = jax.random.uniform(k_wz, (H, K), jnp.float32, -lim_z, lim_z).astype(dtype)
    bz = jax.random.uniform(k_bz, (H,), jnp.float32, -lim_z, lim_z).astype(dtype)
    return h_m, z_m, wg, bg, wz, bz


if __name__ == "__main__":
    key = jax.random.PRNGKey(0)
    k1, k2 = jax.random.split(key)

    # Case 1: small, lane-unaligned H -> unfused fallback path (f32).
    h_m, z_m, wg, bg, wz, bz = _make_case(k1, B=8, H=32, K=16, dtype=jnp.float32)
    params = prepare_gating_fusion_params(wg, bg, wz, bz)
    out = gating_fusion(h_m, z_m, params)
    jax.block_until_ready(out)
    ref = gating_fusion_ref(h_m, z_m, wg, bg, wz, bz)
    assert out.shape == ref.shape
    assert jnp.allclose(out, ref, atol=1e-5, rtol=1e-5), "f32 unfused path mismatch"

    # Case 2: bf16, H multiple of 128, B not a multiple of TB (partial last
    # block), fully VMEM-resident single-buffered weights (n_j == 1).
    h_m, z_m, wg, bg, wz, bz = _make_case(k2, B=40, H=256, K=64, dtype=jnp.bfloat16)
    params = prepare_gating_fusion_params(wg, bg, wz, bz)
    out = gating_fusion(h_m, z_m, params)
    jax.block_until_ready(out)
    ref = gating_fusion_ref(h_m.astype(jnp.float32), z_m.astype(jnp.float32),
                            wg.astype(jnp.float32), bg.astype(jnp.float32),
                            wz.astype(jnp.float32), bz.astype(jnp.float32))
    assert jnp.allclose(out.astype(jnp.float32), ref, atol=5e-2, rtol=5e-2), \
        "bf16 resident-weight path mismatch"

    # Case 3: same data, forced N-tiling (block_n=128) -> streamed interleaved
    # weight blocks + per-j h blend tiles (the large-H path, exercised small).
    params_nt = prepare_gating_fusion_params(wg, bg, wz, bz, block_n=128)
    out_nt = gating_fusion(h_m, z_m, params_nt)
    jax.block_until_ready(out_nt)
    assert jnp.allclose(out_nt.astype(jnp.float32), ref, atol=5e-2, rtol=5e-2), \
        "bf16 N-tiled path mismatch"

    print("KERNEL_OK")
</pallas_src>

<mosaic_0001>
module attributes {stable_mosaic.version = 11 : i64} {
  func.func @_gating_fusion_kernel_unfused(%arg0: i32, %arg1: memref<8x32xf32, #tpu.memory_space<vmem>>, %arg2: memref<8x16xf32, #tpu.memory_space<vmem>>, %arg3: memref<32x32xf32, #tpu.memory_space<vmem>>, %arg4: memref<16x32xf32, #tpu.memory_space<vmem>>, %arg5: memref<16x32xf32, #tpu.memory_space<vmem>>, %arg6: memref<1x32xf32, #tpu.memory_space<vmem>>, %arg7: memref<1x32xf32, #tpu.memory_space<vmem>>, %arg8: memref<8x32xf32, #tpu.memory_space<vmem>>) attributes {dimension_semantics = [#tpu.dimension_semantics<parallel>], iteration_bounds = array<i64: 1>, scalar_prefetch = 0 : i64, scratch_operands = 0 : i64, tpu.core_type = #tpu.core_type<tc>, window_params = [{transform_indices = @transform_0, window_bounds = array<i64: 8, 32>}, {transform_indices = @transform_1, window_bounds = array<i64: 8, 16>}, {pipeline_mode = #tpu.pipeline_mode<synchronous>, transform_indices = @transform_2, window_bounds = array<i64: 32, 32>}, {pipeline_mode = #tpu.pipeline_mode<synchronous>, transform_indices = @transform_3, window_bounds = array<i64: 16, 32>}, {pipeline_mode = #tpu.pipeline_mode<synchronous>, transform_indices = @transform_4, window_bounds = array<i64: 16, 32>}, {pipeline_mode = #tpu.pipeline_mode<synchronous>, transform_indices = @transform_5, window_bounds = array<i64: 1, 32>}, {pipeline_mode = #tpu.pipeline_mode<synchronous>, transform_indices = @transform_6, window_bounds = array<i64: 1, 32>}, {transform_indices = @transform_7, window_bounds = array<i64: 8, 32>}]} {
    %c0 = arith.constant 0 : index
    %c0_0 = arith.constant 0 : index
    %0 = vector.load %arg1[%c0, %c0_0] : memref<8x32xf32, #tpu.memory_space<vmem>>, vector<8x32xf32>
    %c0_1 = arith.constant 0 : index
    %c0_2 = arith.constant 0 : index
    %1 = vector.load %arg2[%c0_1, %c0_2] : memref<8x16xf32, #tpu.memory_space<vmem>>, vector<8x16xf32>
    %c0_3 = arith.constant 0 : index
    %c0_4 = arith.constant 0 : index
    %2 = vector.load %arg3[%c0_3, %c0_4] : memref<32x32xf32, #tpu.memory_space<vmem>>, vector<32x32xf32>
    %cst = arith.constant dense<0.000000e+00> : vector<8x32xf32>
    %3 = tpu.matmul %0, %2, %cst {dimension_numbers = #tpu.dot_dimension_numbers<[1], [0], [0], [1], [0, 0, 1, 1], [], []>} : vector<8x32xf32>, vector<32x32xf32>, vector<8x32xf32> -> vector<8x32xf32>
    %c0_5 = arith.constant 0 : index
    %c0_6 = arith.constant 0 : index
    %4 = vector.load %arg4[%c0_5, %c0_6] : memref<16x32xf32, #tpu.memory_space<vmem>>, vector<16x32xf32>
    %cst_7 = arith.constant dense<0.000000e+00> : vector<8x32xf32>
    %5 = tpu.matmul %1, %4, %cst_7 {dimension_numbers = #tpu.dot_dimension_numbers<[1], [0], [0], [1], [0, 0, 1, 1], [], []>} : vector<8x16xf32>, vector<16x32xf32>, vector<8x32xf32> -> vector<8x32xf32>
    %6 = arith.addf %3, %5 : vector<8x32xf32>
    %c0_8 = arith.constant 0 : index
    %c0_9 = arith.constant 0 : index
    %7 = vector.load %arg6[%c0_8, %c0_9] : memref<1x32xf32, #tpu.memory_space<vmem>>, vector<1x32xf32>
    %8 = vector.broadcast %7 : vector<1x32xf32> to vector<8x32xf32>
    %9 = arith.addf %6, %8 : vector<8x32xf32>
    %10 = arith.negf %9 : vector<8x32xf32>
    %11 = math.exp %10 : vector<8x32xf32>
    %cst_10 = arith.constant 1.000000e+00 : f32
    %12 = vector.broadcast %cst_10 : f32 to vector<8x32xf32>
    %13 = arith.addf %12, %11 : vector<8x32xf32>
    %14 = arith.divf %12, %13 : vector<8x32xf32>
    %c0_11 = arith.constant 0 : index
    %c0_12 = arith.constant 0 : index
    %15 = vector.load %arg5[%c0_11, %c0_12] : memref<16x32xf32, #tpu.memory_space<vmem>>, vector<16x32xf32>
    %cst_13 = arith.constant dense<0.000000e+00> : vector<8x32xf32>
    %16 = tpu.matmul %1, %15, %cst_13 {dimension_numbers = #tpu.dot_dimension_numbers<[1], [0], [0], [1], [0, 0, 1, 1], [], []>} : vector<8x16xf32>, vector<16x32xf32>, vector<8x32xf32> -> vector<8x32xf32>
    %c0_14 = arith.constant 0 : index
    %c0_15 = arith.constant 0 : index
    %17 = vector.load %arg7[%c0_14, %c0_15] : memref<1x32xf32, #tpu.memory_space<vmem>>, vector<1x32xf32>
    %18 = vector.broadcast %17 : vector<1x32xf32> to vector<8x32xf32>
    %19 = arith.addf %16, %18 : vector<8x32xf32>
    %20 = arith.subf %0, %19 : vector<8x32xf32>
    %21 = arith.mulf %14, %20 : vector<8x32xf32>
    %22 = arith.addf %19, %21 : vector<8x32xf32>
    %c0_16 = arith.constant 0 : index
    %c0_17 = arith.constant 0 : index
    %23 = vector.load %arg8[%c0_16, %c0_17] : memref<8x32xf32, #tpu.memory_space<vmem>>, vector<8x32xf32>
    tpu.vector_store %arg8[%c0_16, %c0_17], %22 {strides = array<i32>} : memref<8x32xf32, #tpu.memory_space<vmem>>, vector<8x32xf32>,
    return
  }
  func.func @transform_0(%arg0: i32) -> (i32, i32) {
    %c0_i32 = arith.constant 0 : i32
    %c0_i32_0 = arith.constant 0 : i32
    return %arg0, %c0_i32 : i32, i32
  }
  func.func @transform_1(%arg0: i32) -> (i32, i32) {
    %c0_i32 = arith.constant 0 : i32
    %c0_i32_0 = arith.constant 0 : i32
    return %arg0, %c0_i32 : i32, i32
  }
  func.func @transform_2(%arg0: i32) -> (i32, i32) {
    %c0_i32 = arith.constant 0 : i32
    %c0_i32_0 = arith.constant 0 : i32
    %c0_i32_1 = arith.constant 0 : i32
    return %c0_i32, %c0_i32_0 : i32, i32
  }
  func.func @transform_3(%arg0: i32) -> (i32, i32) {
    %c0_i32 = arith.constant 0 : i32
    %c0_i32_0 = arith.constant 0 : i32
    %c0_i32_1 = arith.constant 0 : i32
    return %c0_i32, %c0_i32_0 : i32, i32
  }
  func.func @transform_4(%arg0: i32) -> (i32, i32) {
    %c0_i32 = arith.constant 0 : i32
    %c0_i32_0 = arith.constant 0 : i32
    %c0_i32_1 = arith.constant 0 : i32
    return %c0_i32, %c0_i32_0 : i32, i32
  }
  func.func @transform_5(%arg0: i32) -> (i32, i32) {
    %c0_i32 = arith.constant 0 : i32
    %c0_i32_0 = arith.constant 0 : i32
    %c0_i32_1 = arith.constant 0 : i32
    return %c0_i32, %c0_i32_0 : i32, i32
  }
  func.func @transform_6(%arg0: i32) -> (i32, i32) {
    %c0_i32 = arith.constant 0 : i32
    %c0_i32_0 = arith.constant 0 : i32
    %c0_i32_1 = arith.constant 0 : i32
    return %c0_i32, %c0_i32_0 : i32, i32
  }
  func.func @transform_7(%arg0: i32) -> (i32, i32) {
    %c0_i32 = arith.constant 0 : i32
    %c0_i32_0 = arith.constant 0 : i32
    return %arg0, %c0_i32 : i32, i32
  }
}

</mosaic_0001>

<llo_original>
// kernel: tpu_custom_call.1
$region0: #{tpu_custom_call.1}
  #allocation0 [shape = 'u32[]', space=smem, size = 0x4, offset = 0x4, fixed_abs, tag = 'smem constant byte address 0x4 - core index']
  #allocation1 [shape = 'u32[144,128]{1,0:T(1,128)}', space=vmem, size = 0x12000, scoped, tag = 'internal scratch']
  %s0 = inlined_call_operand.hbm [shape: f32[8,32], index: 0, kind: input, shape index: {}]
  %s1 = inlined_call_operand.hbm [shape: f32[8,16], index: 1, kind: input, shape index: {}]
  %s2 = inlined_call_operand.hbm [shape: f32[32,32], index: 2, kind: input, shape index: {}]
  %s3 = inlined_call_operand.hbm [shape: f32[16,32], index: 3, kind: input, shape index: {}]
  %s4 = inlined_call_operand.hbm [shape: f32[16,32], index: 4, kind: input, shape index: {}]
  %s5 = inlined_call_operand.vmem [shape: f32[1,32], index: 5, kind: input, shape index: {}]
  %s6 = inlined_call_operand.vmem [shape: f32[1,32], index: 6, kind: input, shape index: {}]
  %s7 = inlined_call_operand.hbm [shape: f32[8,32], index: 7, kind: output, shape index: {}]
  %s8 = sld [smem:[#allocation0]]
  $region58: #{tpu_custom_call.1} parent=0
    _
  %s10 = ssub.s32 1, %s8
  %s11 = scalar_select 0, %s10, %s8
  $region1: #{tpu_custom_call.1} parent=0
    #allocation2 [shape = 'u8[4096]{0}', space=vmem, size = 0x1000, scoped, tag = 'input window, operand 0, single buffered']
    #allocation3 [shape = 's32[1]{0}', space=sflag, size = 0x4, scoped, tag = 'scoped memory for tpu_custom_call.1']
    #allocation4 [shape = 's32[1]{0}', space=sflag, size = 0x4, scoped, tag = 'scoped memory for tpu_custom_call.1']
    #allocation5 [shape = 'u8[4096]{0}', space=vmem, size = 0x1000, scoped, tag = 'input window, operand 1, single buffered']
    #allocation6 [shape = 's32[1]{0}', space=sflag, size = 0x4, scoped, tag = 'scoped memory for tpu_custom_call.1']
    #allocation7 [shape = 'u8[16384]{0}', space=vmem, size = 0x4000, scoped, tag = 'input window, operand 2, single buffered']
    #allocation8 [shape = 'u8[8192]{0}', space=vmem, size = 0x2000, scoped, tag = 'input window, operand 3, single buffered']
    #allocation9 [shape = 's32[1]{0}', space=sflag, size = 0x4, scoped, tag = 'scoped memory for tpu_custom_call.1']
    #allocation10 [shape = 'u8[8192]{0}', space=vmem, size = 0x2000, scoped, tag = 'input window, operand 4, single buffered']
    #allocation11 [shape = 'u8[4096]{0}', space=vmem, size = 0x1000, scoped, tag = 'output window, operand 0, single buffered']
    %12 = vsyncpa [#allocation3], 0
    %13 = vsyncpa [#allocation6], 0
    %14 = vsyncpa [#allocation9], 0
    %15 = vsyncpa [#allocation4], 0
    // Predicated region
    $region2: #{tpu_custom_call.1} parent=1 // pred_check
      _
    $region3: #{tpu_custom_call.1} parent=1 // pred_check_branch
      %17 = sbr.rel (0) target = $region5
    $region4: #{tpu_custom_call.1} parent=1 // pred_region
      %s19 = ssub.s32 128, 128
      %20 = vsyncadd [#allocation3], %s19
      %s22 = sshll.u32 [#allocation2], 4
      %s23 = int_to_ptr.vmem [resolvable:$true] %s22
      %25 = dma.hbm_to_vmem [thread:$0]  %s0, 128, %s23, [#allocation3]
    $region5: #{tpu_custom_call.1} parent=1 // pred_fallthru
      _
    // Predicated region
    $region6: #{tpu_custom_call.1} parent=1 // pred_check
      _
    $region7: #{tpu_custom_call.1} parent=1 // pred_check_branch
      %27 = sbr.rel (0) target = $region9
    $region8: #{tpu_custom_call.1} parent=1 // pred_region
      %s29 = ssub.s32 128, 128
      %30 = vsyncadd [#allocation6], %s29
      %s32 = sshll.u32 [#allocation5], 4
      %s33 = int_to_ptr.vmem [resolvable:$true] %s32
      %35 = dma.hbm_to_vmem [thread:$0]  %s1, 128, %s33, [#allocation6]
    $region9: #{tpu_custom_call.1} parent=1 // pred_fallthru
      _
    // Predicated region
    $region10: #{tpu_custom_call.1} parent=1 // pred_check
      _
    $region11: #{tpu_custom_call.1} parent=1 // pred_check_branch
      %37 = sbr.rel (0) target = $region13
    $region12: #{tpu_custom_call.1} parent=1 // pred_region
      %s39 = ssub.s32 512, 512
      %40 = vsyncadd [#allocation6], %s39
      %s41 = sshll.u32 [#allocation7], 4
      %s42 = int_to_ptr.vmem [resolvable:$true] %s41
      %47 = dma.hbm_to_vmem [thread:$0]  %s2, 512, %s42, [#allocation6], 128, 128, 8
    $region13: #{tpu_custom_call.1} parent=1 // pred_fallthru
      _
    // Predicated region
    $region14: #{tpu_custom_call.1} parent=1 // pred_check
      _
    $region15: #{tpu_custom_call.1} parent=1 // pred_check_branch
      %49 = sbr.rel (0) target = $region17
    $region16: #{tpu_custom_call.1} parent=1 // pred_region
      %s51 = ssub.s32 256, 256
      %52 = vsyncadd [#allocation9], %s51
      %s53 = sshll.u32 [#allocation8], 4
      %s54 = int_to_ptr.vmem [resolvable:$true] %s53
      %59 = dma.hbm_to_vmem [thread:$0]  %s3, 256, %s54, [#allocation9], 128, 128, 8
    $region17: #{tpu_custom_call.1} parent=1 // pred_fallthru
      _
    // Predicated region
    $region18: #{tpu_custom_call.1} parent=1 // pred_check
      _
    $region19: #{tpu_custom_call.1} parent=1 // pred_check_branch
      %61 = sbr.rel (0) target = $region21
    $region20: #{tpu_custom_call.1} parent=1 // pred_region
      %s63 = ssub.s32 256, 256
      %64 = vsyncadd [#allocation9], %s63
      %s65 = sshll.u32 [#allocation10], 4
      %s66 = int_to_ptr.vmem [resolvable:$true] %s65
      %71 = dma.hbm_to_vmem [thread:$0]  %s4, 256, %s66, [#allocation9], 128, 128, 8
    $region21: #{tpu_custom_call.1} parent=1 // pred_fallthru
      _
    // Predicated region
    $region22: #{tpu_custom_call.1} parent=1 // pred_check
      _
    $region23: #{tpu_custom_call.1} parent=1 // pred_check_branch
      %73 = sbr.rel (0) target = $region25
    $region24: #{tpu_custom_call.1} parent=1 // pred_region
      _
    $region25: #{tpu_custom_call.1} parent=1 // pred_fallthru
      _
    // Predicated region
    $region26: #{tpu_custom_call.1} parent=1 // pred_check
      _
    $region27: #{tpu_custom_call.1} parent=1 // pred_check_branch
      %75 = sbr.rel (0) target = $region29
    $region28: #{tpu_custom_call.1} parent=1 // pred_region
      _
    $region29: #{tpu_custom_call.1} parent=1 // pred_fallthru
      _
    // Predicated region
    $region30: #{tpu_custom_call.1} parent=1 // pred_check
      _
    $region31: #{tpu_custom_call.1} parent=1 // pred_check_branch
      %77 = sbr.rel (0) target = $region33
    $region32: #{tpu_custom_call.1} parent=1 // pred_region
      %78 = dma.done [#allocation3], 128
    $region33: #{tpu_custom_call.1} parent=1 // pred_fallthru
      _
    // Predicated region
    $region34: #{tpu_custom_call.1} parent=1 // pred_check
      _
    $region35: #{tpu_custom_call.1} parent=1 // pred_check_branch
      %80 = sbr.rel (0) target = $region37
    $region36: #{tpu_custom_call.1} parent=1 // pred_region
      %81 = dma.done [#allocation6], 128
    $region37: #{tpu_custom_call.1} parent=1 // pred_fallthru
      _
    // Predicated region
    $region38: #{tpu_custom_call.1} parent=1 // pred_check
      _
    $region39: #{tpu_custom_call.1} parent=1 // pred_check_branch
      %83 = sbr.rel (0) target = $region41
    $region40: #{tpu_custom_call.1} parent=1 // pred_region
      %84 = dma.done [#allocation6], 512
    $region41: #{tpu_custom_call.1} parent=1 // pred_fallthru
      _
    // Predicated region
    $region42: #{tpu_custom_call.1} parent=1 // pred_check
      _
    $region43: #{tpu_custom_call.1} parent=1 // pred_check_branch
      %86 = sbr.rel (0) target = $region45
    $region44: #{tpu_custom_call.1} parent=1 // pred_region
      %87 = dma.done [#allocation9], 256
    $region45: #{tpu_custom_call.1} parent=1 // pred_fallthru
      _
    // Predicated region
    $region46: #{tpu_custom_call.1} parent=1 // pred_check
      _
    $region47: #{tpu_custom_call.1} parent=1 // pred_check_branch
      %89 = sbr.rel (0) target = $region49
    $region48: #{tpu_custom_call.1} parent=1 // pred_region
      %90 = dma.done [#allocation9], 256
    $region49: #{tpu_custom_call.1} parent=1 // pred_fallthru
      _
    %v91 = vld [vmem:[#allocation2] sm:$0xff]
    %v92 = vld [vmem:[#allocation5] sm:$0xff]
    %v93 = vld [vmem:[#allocation7] sm:$0xff]
    %v94 = vld [vmem:[#allocation7 + $0x8] sm:$0xff]
    %v95 = vld [vmem:[#allocation7 + $0x10] sm:$0xff]
    %v96 = vld [vmem:[#allocation7 + $0x18] sm:$0xff]
    %v97 = vld [vmem:[#allocation8] sm:$0xff]
    %v98 = vld [vmem:[#allocation8 + $0x8] sm:$0xff]
    %vm99 = vcmask 130048
    %v101 = vsel %vm99, %v92, 0
    %103 = vmatprep.subr.mxu0 0.0
    %104 = vmatpush1.msra.mxu0 %v97
    %105 = vmatprep.subr.mxu0 0.0
    %106 = vmatpush1.msra.mxu0 %v98
    %107 = vmatprep.subr.mxu0 0.0
    %108 = vmatpush1.msra.mxu0 0.0
    %109 = vmatprep.subr.mxu0 0.0
    %110 = vmatpush1.msra.mxu0 0.0
    %111 = vmatprep.subr.mxu0 0.0
    %112 = vmatpush1.msra.mxu0 0.0
    %113 = vmatprep.subr.mxu0 0.0
    %114 = vmatpush1.msra.mxu0 0.0
    %115 = vmatprep.subr.mxu0 0.0
    %116 = vmatpush1.msra.mxu0 0.0
    %117 = vmatprep.subr.mxu0 0.0
    %118 = vmatpush1.msra.mxu0 0.0
    %119 = vmatprep.subr.mxu0 0.0
    %120 = vmatpush1.msra.mxu0 0.0
    %121 = vmatprep.subr.mxu0 0.0
    %122 = vmatpush1.msra.mxu0 0.0
    %123 = vmatprep.subr.mxu0 0.0
    %124 = vmatpush1.msra.mxu0 0.0
    %125 = vmatprep.subr.mxu0 0.0
    %126 = vmatpush1.msra.mxu0 0.0
    %127 = vmatprep.subr.mxu0 0.0
    %128 = vmatpush1.msra.mxu0 0.0
    %129 = vmatprep.subr.mxu0 0.0
    %130 = vmatpush1.msra.mxu0 0.0
    %131 = vmatprep.subr.mxu0 0.0
    %132 = vmatpush1.msra.mxu0 0.0
    %133 = vmatprep.subr.mxu0 0.0
    %134 = vmatpush1.msra.mxu0 0.0
    %135 = vmatprep.subr.mxu0 0.0
    %136 = vmatpush1.msra.mxu0 0.0
    %137 = vmatprep.subr.mxu0 0.0
    %138 = vmatpush1.msra.mxu0 0.0
    %139 = vmatprep.subr.mxu0 0.0
    %140 = vmatpush1.msra.mxu0 0.0
    %141 = vmatprep.subr.mxu0 0.0
    %142 = vmatpush1.msra.mxu0 0.0
    %143 = vmatprep.subr.mxu0 0.0
    %144 = vmatpush1.msra.mxu0 0.0
    %145 = vmatprep.subr.mxu0 0.0
    %146 = vmatpush1.msra.mxu0 0.0
    %147 = vmatprep.subr.mxu0 0.0
    %148 = vmatpush1.msra.mxu0 0.0
    %149 = vmatprep.subr.mxu0 0.0
    %150 = vmatpush1.msra.mxu0 0.0
    %151 = vmatprep.subr.mxu0 0.0
    %152 = vmatpush1.msra.mxu0 0.0
    %153 = vmatprep.subr.mxu0 0.0
    %154 = vmatpush1.msra.mxu0 0.0
    %155 = vmatprep.subr.mxu0 0.0
    %156 = vmatpush1.msra.mxu0 0.0
    %157 = vmatprep.subr.mxu0 0.0
    %158 = vmatpush1.msra.mxu0 0.0
    %159 = vmatprep.subr.mxu0 0.0
    %160 = vmatpush1.msra.mxu0 0.0
    %161 = vmatprep.subr.mxu0 0.0
    %162 = vmatpush1.msra.mxu0 0.0
    %163 = vmatprep.subr.mxu0 0.0
    %164 = vmatpush1.msra.mxu0 0.0
    %165 = vmatprep.subr.mxu0 0.0
    %166 = vmatpush1.msra.mxu0 0.0
    %167 = vmatprep.mubr.f32.mxu0 0.0
    %168 = vmatmul.mubr.f32.gmra.mrb[0].mxu0 %v101
    %v169 = vpop.f32.mrb[0].mxu0
    %v170 = vadd.f32 0.0, %v169
    %v171 = vpop.f32.mrb[0].mxu0
    %172 = vdwg.mxu0
    %vm173 = vcmask 261120
    %v175 = vsel %vm173, %v91, 0
    %177 = vmatprep.subr.mxu0 0.0
    %178 = vmatpush1.msra.mxu0 %v93
    %179 = vmatprep.subr.mxu0 0.0
    %180 = vmatpush1.msra.mxu0 %v94
    %181 = vmatprep.subr.mxu0 0.0
    %182 = vmatpush1.msra.mxu0 %v95
    %183 = vmatprep.subr.mxu0 0.0
    %184 = vmatpush1.msra.mxu0 %v96
    %185 = vmatprep.subr.mxu0 0.0
    %186 = vmatpush1.msra.mxu0 0.0
    %187 = vmatprep.subr.mxu0 0.0
    %188 = vmatpush1.msra.mxu0 0.0
    %189 = vmatprep.subr.mxu0 0.0
    %190 = vmatpush1.msra.mxu0 0.0
    %191 = vmatprep.subr.mxu0 0.0
    %192 = vmatpush1.msra.mxu0 0.0
    %193 = vmatprep.subr.mxu0 0.0
    %194 = vmatpush1.msra.mxu0 0.0
    %195 = vmatprep.subr.mxu0 0.0
    %196 = vmatpush1.msra.mxu0 0.0
    %197 = vmatprep.subr.mxu0 0.0
    %198 = vmatpush1.msra.mxu0 0.0
    %199 = vmatprep.subr.mxu0 0.0
    %200 = vmatpush1.msra.mxu0 0.0
    %201 = vmatprep.subr.mxu0 0.0
    %202 = vmatpush1.msra.mxu0 0.0
    %203 = vmatprep.subr.mxu0 0.0
    %204 = vmatpush1.msra.mxu0 0.0
    %205 = vmatprep.subr.mxu0 0.0
    %206 = vmatpush1.msra.mxu0 0.0
    %207 = vmatprep.subr.mxu0 0.0
    %208 = vmatpush1.msra.mxu0 0.0
    %209 = vmatprep.subr.mxu0 0.0
    %210 = vmatpush1.msra.mxu0 0.0
    %211 = vmatprep.subr.mxu0 0.0
    %212 = vmatpush1.msra.mxu0 0.0
    %213 = vmatprep.subr.mxu0 0.0
    %214 = vmatpush1.msra.mxu0 0.0
    %215 = vmatprep.subr.mxu0 0.0
    %216 = vmatpush1.msra.mxu0 0.0
    %217 = vmatprep.subr.mxu0 0.0
    %218 = vmatpush1.msra.mxu0 0.0
    %219 = vmatprep.subr.mxu0 0.0
    %220 = vmatpush1.msra.mxu0 0.0
    %221 = vmatprep.subr.mxu0 0.0
    %222 = vmatpush1.msra.mxu0 0.0
    %223 = vmatprep.subr.mxu0 0.0
    %224 = vmatpush1.msra.mxu0 0.0
    %225 = vmatprep.subr.mxu0 0.0
    %226 = vmatpush1.msra.mxu0 0.0
    %227 = vmatprep.subr.mxu0 0.0
    %228 = vmatpush1.msra.mxu0 0.0
    %229 = vmatprep.subr.mxu0 0.0
    %230 = vmatpush1.msra.mxu0 0.0
    %231 = vmatprep.subr.mxu0 0.0
    %232 = vmatpush1.msra.mxu0 0.0
    %233 = vmatprep.subr.mxu0 0.0
    %234 = vmatpush1.msra.mxu0 0.0
    %235 = vmatprep.subr.mxu0 0.0
    %236 = vmatpush1.msra.mxu0 0.0
    %237 = vmatprep.subr.mxu0 0.0
    %238 = vmatpush1.msra.mxu0 0.0
    %239 = vmatprep.subr.mxu0 0.0
    %240 = vmatpush1.msra.mxu0 0.0
    %241 = vmatprep.mubr.f32.mxu0 0.0
    %242 = vmatmul.mubr.f32.gmra.mrb[0].mxu0 %v175
    %v243 = vpop.f32.mrb[0].mxu0
    %v244 = vadd.f32 %v170, %v243
    %v245 = vpop.f32.mrb[0].mxu0
    %246 = vdwg.mxu0
    %v247 = vld [vmem:[%s5] sm:$0x1]
    %v249 = vlaneseq
    %v250 = vshrl.u32 %v249, 7
    %v251 = vsub.s32 0, %v250
    %v252 = vrot.slane %v247, %v251
    %v254 = vadd.f32 %v244, %v252
    %v255 = vxor.u32 %v254, 2147483648
    %v256 = vmul.f32 %v255, 1.442695
    %v257 = vpow.pop %v256
    %v258 = vadd.f32 %v257, 1.0
    %v259 = vrcp.pop %v258
    %v260 = vmul.f32 1.0, %v259
    %v261 = vld [vmem:[#allocation10] sm:$0xff]
    %v262 = vld [vmem:[#allocation10 + $0x8] sm:$0xff]
    %v263 = vld [vmem:[%s6] sm:$0x1]
    %v265 = vlaneseq
    %v266 = vshrl.u32 %v265, 7
    %v267 = vsub.s32 0, %v266
    %v268 = vrot.slane %v263, %v267
    %270 = vmatprep.subr.mxu0 0.0
    %271 = vmatpush1.msra.mxu0 %v261
    %272 = vmatprep.subr.mxu0 0.0
    %273 = vmatpush1.msra.mxu0 %v262
    %274 = vmatprep.subr.mxu0 0.0
    %275 = vmatpush1.msra.mxu0 0.0
    %276 = vmatprep.subr.mxu0 0.0
    %277 = vmatpush1.msra.mxu0 0.0
    %278 = vmatprep.subr.mxu0 0.0
    %279 = vmatpush1.msra.mxu0 0.0
    %280 = vmatprep.subr.mxu0 0.0
    %281 = vmatpush1.msra.mxu0 0.0
    %282 = vmatprep.subr.mxu0 0.0
    %283 = vmatpush1.msra.mxu0 0.0
    %284 = vmatprep.subr.mxu0 0.0
    %285 = vmatpush1.msra.mxu0 0.0
    %286 = vmatprep.subr.mxu0 0.0
    %287 = vmatpush1.msra.mxu0 0.0
    %288 = vmatprep.subr.mxu0 0.0
    %289 = vmatpush1.msra.mxu0 0.0
    %290 = vmatprep.subr.mxu0 0.0
    %291 = vmatpush1.msra.mxu0 0.0
    %292 = vmatprep.subr.mxu0 0.0
    %293 = vmatpush1.msra.mxu0 0.0
    %294 = vmatprep.subr.mxu0 0.0
    %295 = vmatpush1.msra.mxu0 0.0
    %296 = vmatprep.subr.mxu0 0.0
    %297 = vmatpush1.msra.mxu0 0.0
    %298 = vmatprep.subr.mxu0 0.0
    %299 = vmatpush1.msra.mxu0 0.0
    %300 = vmatprep.subr.mxu0 0.0
    %301 = vmatpush1.msra.mxu0 0.0
    %302 = vmatprep.subr.mxu0 0.0
    %303 = vmatpush1.msra.mxu0 0.0
    %304 = vmatprep.subr.mxu0 0.0
    %305 = vmatpush1.msra.mxu0 0.0
    %306 = vmatprep.subr.mxu0 0.0
    %307 = vmatpush1.msra.mxu0 0.0
    %308 = vmatprep.subr.mxu0 0.0
    %309 = vmatpush1.msra.mxu0 0.0
    %310 = vmatprep.subr.mxu0 0.0
    %311 = vmatpush1.msra.mxu0 0.0
    %312 = vmatprep.subr.mxu0 0.0
    %313 = vmatpush1.msra.mxu0 0.0
    %314 = vmatprep.subr.mxu0 0.0
    %315 = vmatpush1.msra.mxu0 0.0
    %316 = vmatprep.subr.mxu0 0.0
    %317 = vmatpush1.msra.mxu0 0.0
    %318 = vmatprep.subr.mxu0 0.0
    %319 = vmatpush1.msra.mxu0 0.0
    %320 = vmatprep.subr.mxu0 0.0
    %321 = vmatpush1.msra.mxu0 0.0
    %322 = vmatprep.subr.mxu0 0.0
    %323 = vmatpush1.msra.mxu0 0.0
    %324 = vmatprep.subr.mxu0 0.0
    %325 = vmatpush1.msra.mxu0 0.0
    %326 = vmatprep.subr.mxu0 0.0
    %327 = vmatpush1.msra.mxu0 0.0
    %328 = vmatprep.subr.mxu0 0.0
    %329 = vmatpush1.msra.mxu0 0.0
    %330 = vmatprep.subr.mxu0 0.0
    %331 = vmatpush1.msra.mxu0 0.0
    %332 = vmatprep.subr.mxu0 0.0
    %333 = vmatpush1.msra.mxu0 0.0
    %334 = vmatprep.mubr.f32.mxu0 0.0
    %335 = vmatmul.mubr.f32.gmra.mrb[0].mxu0 %v101
    %v336 = vpop.f32.mrb[0].mxu0
    %v337 = vadd.f32 %v268, %v336
    %v338 = vpop.f32.mrb[0].mxu0
    %339 = vdwg.mxu0
    %v340 = vsub.f32 %v91, %v337
    %v341 = vmul.f32 %v260, %v340
    %v342 = vadd.f32 %v337, %v341
    %343 = vst.msk [vmem:[#allocation11] sm:$0xff] %vm173, %v342
    // Predicated region
    $region50: #{tpu_custom_call.1} parent=1 // pred_check
      _
    $region51: #{tpu_custom_call.1} parent=1 // pred_check_branch
      %345 = sbr.rel (0) target = $region53
    $region52: #{tpu_custom_call.1} parent=1 // pred_region
      %s347 = ssub.s32 128, 128
      %348 = vsyncadd [#allocation4], %s347
      %s350 = sshll.u32 [#allocation11], 4
      %s351 = int_to_ptr.vmem [resolvable:$true] %s350
      %353 = dma.vmem_to_hbm [thread:$0]  %s351, 128, %s7, [#allocation4]
    $region53: #{tpu_custom_call.1} parent=1 // pred_fallthru
      _
    // Predicated region
    $region54: #{tpu_custom_call.1} parent=1 // pred_check
      _
    $region55: #{tpu_custom_call.1} parent=1 // pred_check_branch
      %355 = sbr.rel (0) target = $region57
    $region56: #{tpu_custom_call.1} parent=1 // pred_region
      %356 = dma.done [#allocation4], 128
    $region57: #{tpu_custom_call.1} parent=1 // pred_fallthru
      _
    %357 = vsyncpa [#allocation3], 1
    %358 = vsyncpa [#allocation6], 1
    %359 = vsyncpa [#allocation9], 1
    %360 = vsyncpa [#allocation4], 1

</llo_original>
